<compile_context>
chip_gen: v5e
topology: v5e:2x2
jax: 0.10.0
libtpu: 0.0.40
codegen_flags: <defaults>
</compile_context>

<pallas_src>
import math

import jax
import jax.numpy as jnp
import numpy as np
from jax.experimental import pallas as pl
from jax.experimental.pallas import tpu as pltpu


def attn_kernel(x_ref, es_ref, w_ref, bias_ref, wen_ref, ben_ref, out_ref):
    """Single-invocation kernel; all operands are tiny and fully VMEM-resident.

    x_ref:    (B*S, 2H) f32   [enc | hidden] batch-major packed
    es_ref:   (B, 1, 1) int32 valid lengths per batch element
    w_ref:    (2H, H)   f32   [We^T ; Wh^T]
    bias_ref: (1, H)    f32   be + bh
    wen_ref:  (H, 1)    f32   Wen^T
    ben_ref:  (1, 1)    f32
    out_ref:  (B, S, 1) f32   attention weights (softmax over S)
    """
    B, S, _ = out_ref.shape

    # Fused projection: enc_proj + hid_proj + (be + bh) in one MXU matmul.
    proj = jnp.dot(x_ref[...], w_ref[...],
                   preferred_element_type=jnp.float32,
                   precision=jax.lax.Precision.HIGHEST) + bias_ref[...]

    # Sigmoid: exp on the EUP + VPU add/divide. |proj| is small, so the
    # direct formulation is numerically fine.
    act = 1.0 / (1.0 + jnp.exp(-proj))                       # (B*S, H)

    # Linear(H -> 1) as a second MXU contraction -> (B*S, 1).
    energy = jnp.dot(act, wen_ref[...],
                     preferred_element_type=jnp.float32,
                     precision=jax.lax.Precision.HIGHEST) + ben_ref[...]
    e3 = energy.reshape(B, S, 1)                             # free sublane split

    # Mask positions s >= each_size[b].
    # (each_size == 0 would make a whole row -inf and yield NaN, exactly like
    #  the PyTorch module's softmax over an all -inf column.)
    col = jax.lax.broadcasted_iota(jnp.int32, (B, S, 1), 1)
    e3 = jnp.where(col >= es_ref[...], -jnp.inf, e3)

    # Stable softmax over the sequence (sublane) axis.
    m = jnp.max(e3, axis=1, keepdims=True)
    ex = jnp.exp(e3 - m)
    out_ref[...] = ex / jnp.sum(ex, axis=1, keepdims=True)


def attn_forward(hidden, encoder_outputs, each_size, params):
    """Layout/packing glue + a single pallas_call + output permute."""
    We, be, Wh, bh, Wen, ben = params
    S, B, H = encoder_outputs.shape

    # Batch-major packing: (S,B,H) -> (B,S,H) -> (B*S,H); hidden broadcast over S.
    enc_bm = jnp.transpose(encoder_outputs, (1, 0, 2)).reshape(B * S, H)
    hid_bc = jnp.broadcast_to(hidden[:, None, :], (B, S, H)).reshape(B * S, H)
    x = jnp.concatenate([enc_bm, hid_bc], axis=-1)           # (B*S, 2H)

    # Weight / bias folding; pre-transposed so the kernel never transposes.
    w = jnp.concatenate([We.T, Wh.T], axis=0)                # (2H, H)
    bias = (be + bh).reshape(1, H)
    wen_col = Wen.T                                          # (H, 1)
    ben_2d = ben.reshape(1, 1)
    es3 = each_size.astype(jnp.int32).reshape(B, 1, 1)

    vmem = pl.BlockSpec(memory_space=pltpu.MemorySpace.VMEM)
    out = pl.pallas_call(
        attn_kernel,
        out_shape=jax.ShapeDtypeStruct((B, S, 1), jnp.float32),
        in_specs=[vmem] * 6,
        out_specs=vmem,
    )(x, es3, w, bias, wen_col, ben_2d)

    # torch: softmax over (S,B,1) then permute(1,2,0) -> (B,1,S)
    return jnp.transpose(out, (0, 2, 1))


def attn_reference(hidden, encoder_outputs, each_size, params):
    """Pure-JAX reference mirroring the PyTorch module."""
    We, be, Wh, bh, Wen, ben = params
    S, B, H = encoder_outputs.shape
    hp = jax.lax.Precision.HIGHEST
    enc_proj = jnp.einsum('sbh,oh->sbo', encoder_outputs, We, precision=hp) + be
    hid_proj = jnp.dot(hidden, Wh.T, precision=hp) + bh
    act = jax.nn.sigmoid(enc_proj + hid_proj[None])
    energy = jnp.einsum('sbo,ko->sbk', act, Wen, precision=hp) + ben   # (S,B,1)
    seq_idx = jnp.arange(S)[:, None]
    mask = seq_idx >= each_size[None, :]
    energy = jnp.where(mask[..., None], -jnp.inf, energy)
    attn = jax.nn.softmax(energy, axis=0)
    return jnp.transpose(attn, (1, 2, 0))                    # (B, 1, S)


def make_params(key, hidden_size):
    """Deterministic PyTorch-style (uniform +/- 1/sqrt(fan_in)) initialization."""
    H = hidden_size
    bound = 1.0 / math.sqrt(H)
    ks = jax.random.split(key, 6)
    We = jax.random.uniform(ks[0], (H, H), jnp.float32, -bound, bound)
    be = jax.random.uniform(ks[1], (H,), jnp.float32, -bound, bound)
    Wh = jax.random.uniform(ks[2], (H, H), jnp.float32, -bound, bound)
    bh = jax.random.uniform(ks[3], (H,), jnp.float32, -bound, bound)
    Wen = jax.random.uniform(ks[4], (1, H), jnp.float32, -bound, bound)
    ben = jax.random.uniform(ks[5], (1,), jnp.float32, -bound, bound)
    return (We, be, Wh, bh, Wen, ben)


if __name__ == "__main__":
    H = 32   # hidden_size
    S = 8    # seq_len (max_length)
    B = 4    # batch_size

    key = jax.random.PRNGKey(0)
    k_h, k_e, k_s, k_p = jax.random.split(key, 4)

    hidden = jax.random.normal(k_h, (B, H), jnp.float32)
    encoder_outputs = jax.random.normal(k_e, (S, B, H), jnp.float32)
    each_size = jax.random.randint(k_s, (B,), 1, S + 1, jnp.int32)
    params = make_params(k_p, H)

    attn_fn = jax.jit(attn_forward)
    out = attn_fn(hidden, encoder_outputs, each_size, params)
    out = jax.block_until_ready(out)

    ref = attn_reference(hidden, encoder_outputs, each_size, params)
    assert out.shape == (B, 1, S), out.shape
    np.testing.assert_allclose(np.asarray(out), np.asarray(ref),
                               rtol=1e-5, atol=1e-5)

    print("KERNEL_OK")
</pallas_src>

<mosaic_0001>
module attributes {stable_mosaic.version = 11 : i64} {
  func.func @attn_kernel(%arg0: memref<32x64xf32, #tpu.memory_space<vmem>>, %arg1: memref<4x1x1xi32, #tpu.memory_space<vmem>>, %arg2: memref<64x32xf32, #tpu.memory_space<vmem>>, %arg3: memref<1x32xf32, #tpu.memory_space<vmem>>, %arg4: memref<32x1xf32, #tpu.memory_space<vmem>>, %arg5: memref<1x1xf32, #tpu.memory_space<vmem>>, %arg6: memref<4x8x1xf32, #tpu.memory_space<vmem>>) attributes {dimension_semantics = [], scalar_prefetch = 0 : i64, scratch_operands = 0 : i64, tpu.core_type = #tpu.core_type<tc>} {
    %c0 = arith.constant 0 : index
    %c0_0 = arith.constant 0 : index
    %0 = vector.load %arg0[%c0, %c0_0] : memref<32x64xf32, #tpu.memory_space<vmem>>, vector<32x64xf32>
    %c0_1 = arith.constant 0 : index
    %c0_2 = arith.constant 0 : index
    %1 = vector.load %arg2[%c0_1, %c0_2] : memref<64x32xf32, #tpu.memory_space<vmem>>, vector<64x32xf32>
    %cst = arith.constant dense<0.000000e+00> : vector<32x32xf32>
    %2 = tpu.matmul %0, %1, %cst {dimension_numbers = #tpu.dot_dimension_numbers<[1], [0], [0], [1], [0, 0, 1, 1], [], []>, precision = #tpu.contract_precision<fp32>} : vector<32x64xf32>, vector<64x32xf32>, vector<32x32xf32> -> vector<32x32xf32>
    %c0_3 = arith.constant 0 : index
    %c0_4 = arith.constant 0 : index
    %3 = vector.load %arg3[%c0_3, %c0_4] : memref<1x32xf32, #tpu.memory_space<vmem>>, vector<1x32xf32>
    %4 = vector.broadcast %3 : vector<1x32xf32> to vector<32x32xf32>
    %5 = arith.addf %2, %4 : vector<32x32xf32>
    %cst_5 = arith.constant 0.000000e+00 : f32
    %6 = vector.broadcast %cst_5 : f32 to vector<32x32xf32>
    %7 = arith.subf %6, %5 : vector<32x32xf32>
    %8 = math.exp %7 : vector<32x32xf32>
    %cst_6 = arith.constant 1.000000e+00 : f32
    %9 = vector.broadcast %cst_6 : f32 to vector<32x32xf32>
    %10 = arith.addf %9, %8 : vector<32x32xf32>
    %cst_7 = arith.constant 1.000000e+00 : f32
    %11 = vector.broadcast %cst_7 : f32 to vector<32x32xf32>
    %12 = arith.divf %11, %10 : vector<32x32xf32>
    %c0_8 = arith.constant 0 : index
    %c0_9 = arith.constant 0 : index
    %13 = vector.load %arg4[%c0_8, %c0_9] : memref<32x1xf32, #tpu.memory_space<vmem>>, vector<32x1xf32>
    %cst_10 = arith.constant dense<0.000000e+00> : vector<32x1xf32>
    %14 = tpu.matmul %12, %13, %cst_10 {dimension_numbers = #tpu.dot_dimension_numbers<[1], [0], [0], [1], [0, 0, 1, 1], [], []>, precision = #tpu.contract_precision<fp32>} : vector<32x32xf32>, vector<32x1xf32>, vector<32x1xf32> -> vector<32x1xf32>
    %c0_11 = arith.constant 0 : index
    %c0_12 = arith.constant 0 : index
    %15 = vector.load %arg5[%c0_11, %c0_12] : memref<1x1xf32, #tpu.memory_space<vmem>>, vector<1x1xf32>
    %16 = vector.broadcast %15 : vector<1x1xf32> to vector<32x1xf32>
    %17 = arith.addf %14, %16 : vector<32x1xf32>
    %18 = vector.shape_cast %17 : vector<32x1xf32> to vector<4x8x1xf32>
    %19 = tpu.iota {dimensions = array<i32: 1>} : vector<4x8x1xi32>
    %c0_13 = arith.constant 0 : index
    %c0_14 = arith.constant 0 : index
    %c0_15 = arith.constant 0 : index
    %20 = vector.load %arg1[%c0_13, %c0_14, %c0_15] : memref<4x1x1xi32, #tpu.memory_space<vmem>>, vector<4x1x1xi32>
    %21 = vector.broadcast %20 : vector<4x1x1xi32> to vector<4x8x1xi32>
    %22 = arith.cmpi sge, %19, %21 : vector<4x8x1xi32>
    %cst_16 = arith.constant 0xFF800000 : f32
    %23 = vector.broadcast %cst_16 : f32 to vector<4x8x1xf32>
    %24 = arith.select %22, %23, %18 : vector<4x8x1xi1>, vector<4x8x1xf32>
    %cst_17 = arith.constant dense<0xFF800000> : vector<4x1xf32>
    %25 = vector.multi_reduction <maximumf>, %24, %cst_17 [1] : vector<4x8x1xf32> to vector<4x1xf32>
    %26 = vector.shape_cast %25 : vector<4x1xf32> to vector<4x1x1xf32>
    %27 = vector.broadcast %26 : vector<4x1x1xf32> to vector<4x8x1xf32>
    %28 = arith.subf %24, %27 : vector<4x8x1xf32>
    %29 = math.exp %28 : vector<4x8x1xf32>
    %cst_18 = arith.constant dense<0.000000e+00> : vector<4x1xf32>
    %30 = vector.multi_reduction <add>, %29, %cst_18 [1] : vector<4x8x1xf32> to vector<4x1xf32>
    %31 = vector.shape_cast %30 : vector<4x1xf32> to vector<4x1x1xf32>
    %32 = vector.broadcast %31 : vector<4x1x1xf32> to vector<4x8x1xf32>
    %33 = arith.divf %29, %32 : vector<4x8x1xf32>
    %c0_19 = arith.constant 0 : index
    %c0_20 = arith.constant 0 : index
    %c0_21 = arith.constant 0 : index
    %34 = vector.load %arg6[%c0_19, %c0_20, %c0_21] : memref<4x8x1xf32, #tpu.memory_space<vmem>>, vector<4x8x1xf32>
    tpu.vector_store %arg6[%c0_19, %c0_20, %c0_21], %33 {strides = array<i32>} : memref<4x8x1xf32, #tpu.memory_space<vmem>>, vector<4x8x1xf32>,
    return
  }
}

</mosaic_0001>

<llo_original>
// kernel: attn_forward.1
$region0: #{attn_forward.1}
  #allocation0 [shape = 'u32[]', space=smem, size = 0x4, offset = 0x4, fixed_abs, tag = 'smem constant byte address 0x4 - core index']
  #allocation1 [shape = 'u32[72,128]{1,0:T(1,128)}', space=vmem, size = 0x9000, scoped, tag = 'internal scratch']
  #allocation2 [shape = 'f32[1,1]{1,0:T(1,128)S(1)}', space=vmem, size = 0x200, scoped, tag = 'scoped memory for attn_forward.1']
  %s0 = inlined_call_operand.vmem [shape: f32[32,64], index: 0, kind: input, shape index: {}]
  %s1 = inlined_call_operand.vmem [shape: s32[4,1,1], index: 1, kind: input, shape index: {}]
  %s2 = inlined_call_operand.vmem [shape: f32[64,32], index: 2, kind: input, shape index: {}]
  %s3 = inlined_call_operand.vmem [shape: f32[1,32], index: 3, kind: input, shape index: {}]
  %s4 = inlined_call_operand.vmem [shape: f32[32,1], index: 4, kind: input, shape index: {}]
  %s5 = inlined_call_operand.<no memory space> [shape: f32[1,1], index: 5, kind: input, shape index: {}]
  %s6 = inlined_call_operand.vmem [shape: f32[4,8,1], index: 6, kind: output, shape index: {}]
  %s7 = sld [smem:[#allocation0]]
  $region34: #{attn_forward.1} parent=0
    _
  %s9 = ssub.s32 1, %s7
  %s10 = scalar_select 0, %s9, %s7
  %v11 = vstv %s5
  %12 = vst [vmem:[#allocation2] sm:$0x1] %v11
  // Predicated region
  $region2: #{attn_forward.1} parent=0 // pred_check
    _
  $region3: #{attn_forward.1} parent=0 // pred_check_branch
    %14 = sbr.rel (0) target = $region5
  $region4: #{attn_forward.1} parent=0 // pred_region
    _
  $region5: #{attn_forward.1} parent=0 // pred_fallthru
    _
  // Predicated region
  $region6: #{attn_forward.1} parent=0 // pred_check
    _
  $region7: #{attn_forward.1} parent=0 // pred_check_branch
    %16 = sbr.rel (0) target = $region9
  $region8: #{attn_forward.1} parent=0 // pred_region
    _
  $region9: #{attn_forward.1} parent=0 // pred_fallthru
    _
  // Predicated region
  $region10: #{attn_forward.1} parent=0 // pred_check
    _
  $region11: #{attn_forward.1} parent=0 // pred_check_branch
    %18 = sbr.rel (0) target = $region13
  $region12: #{attn_forward.1} parent=0 // pred_region
    _
  $region13: #{attn_forward.1} parent=0 // pred_fallthru
    _
  // Predicated region
  $region14: #{attn_forward.1} parent=0 // pred_check
    _
  $region15: #{attn_forward.1} parent=0 // pred_check_branch
    %20 = sbr.rel (0) target = $region17
  $region16: #{attn_forward.1} parent=0 // pred_region
    _
  $region17: #{attn_forward.1} parent=0 // pred_fallthru
    _
  // Predicated region
  $region18: #{attn_forward.1} parent=0 // pred_check
    _
  $region19: #{attn_forward.1} parent=0 // pred_check_branch
    %22 = sbr.rel (0) target = $region21
  $region20: #{attn_forward.1} parent=0 // pred_region
    _
  $region21: #{attn_forward.1} parent=0 // pred_fallthru
    _
  // Predicated region
  $region22: #{attn_forward.1} parent=0 // pred_check
    _
  $region23: #{attn_forward.1} parent=0 // pred_check_branch
    %24 = sbr.rel (0) target = $region25
  $region24: #{attn_forward.1} parent=0 // pred_region
    _
  $region25: #{attn_forward.1} parent=0 // pred_fallthru
    _
  %v25 = vld [vmem:[%s0] sm:$0xff]
  %v26 = vld [vmem:[%s0 + $0x8] sm:$0xff]
  %v27 = vld [vmem:[%s0 + $0x10] sm:$0xff]
  %v28 = vld [vmem:[%s0 + $0x18] sm:$0xff]
  %v29 = vld [vmem:[%s2] sm:$0xff]
  %v30 = vld [vmem:[%s2 + $0x8] sm:$0xff]
  %v31 = vld [vmem:[%s2 + $0x10] sm:$0xff]
  %v32 = vld [vmem:[%s2 + $0x18] sm:$0xff]
  %v33 = vld [vmem:[%s2 + $0x20] sm:$0xff]
  %v34 = vld [vmem:[%s2 + $0x28] sm:$0xff]
  %v35 = vld [vmem:[%s2 + $0x30] sm:$0xff]
  %v36 = vld [vmem:[%s2 + $0x38] sm:$0xff]
  %v37 = vld [vmem:[%s3] sm:$0x1]
  %v39 = vperm.slane %v37, 0
  %vm41 = vcmask 523264
  %v43 = vsel %vm41, %v25, 0
  %v46 = vsel %vm41, %v26, 0
  %v49 = vsel %vm41, %v27, 0
  %v52 = vsel %vm41, %v28, 0
  %54 = vmatpush.msra.mxu0 0.0
  %55 = vmatpush.msra.mxu0 0.0
  %56 = vmatpush.msra.mxu0 0.0
  %57 = vmatpush.msra.mxu0 0.0
  %58 = vmatpush.msra.mxu0 0.0
  %59 = vmatpush.msra.mxu0 0.0
  %60 = vmatpush.msra.mxu0 0.0
  %61 = vmatpush.msra.mxu0 0.0
  %v62 = vand.u32 %v36, 4294901760
  %63 = vmatpush.msra.mxu0 %v62
  %v64 = vand.u32 %v35, 4294901760
  %65 = vmatpush.msra.mxu0 %v64
  %v66 = vand.u32 %v34, 4294901760
  %67 = vmatpush.msra.mxu0 %v66
  %v68 = vand.u32 %v33, 4294901760
  %69 = vmatpush.msra.mxu0 %v68
  %v70 = vand.u32 %v32, 4294901760
  %71 = vmatpush.msra.mxu0 %v70
  %v72 = vand.u32 %v31, 4294901760
  %73 = vmatpush.msra.mxu0 %v72
  %v74 = vand.u32 %v30, 4294901760
  %75 = vmatpush.msra.mxu0 %v74
  %v76 = vand.u32 %v29, 4294901760
  %77 = vmatpush.msra.mxu0 %v76
  %v78 = vand.u32 %v43, 4294901760
  %v79 = vsub.f32 %v43, %v78
  %v80 = vand.u32 %v79, 4294901760
  %v81 = vsub.f32 %v79, %v80
  %v82 = vand.u32 %v81, 4294901760
  %83 = vmatmul.f32.gmra.mxu0 %v82
  %v84 = vpop.f32.mrf.mxu0
  %v85 = vadd.f32 %v39, %v84
  %v86 = vand.u32 %v46, 4294901760
  %v87 = vsub.f32 %v46, %v86
  %v88 = vand.u32 %v87, 4294901760
  %v89 = vsub.f32 %v87, %v88
  %v90 = vand.u32 %v89, 4294901760
  %91 = vmatmul.f32.gmra.mxu0 %v90
  %v92 = vpop.f32.mrf.mxu0
  %v93 = vadd.f32 %v39, %v92
  %v94 = vand.u32 %v49, 4294901760
  %v95 = vsub.f32 %v49, %v94
  %v96 = vand.u32 %v95, 4294901760
  %v97 = vsub.f32 %v95, %v96
  %v98 = vand.u32 %v97, 4294901760
  %99 = vmatmul.f32.gmra.mxu0 %v98
  %v100 = vpop.f32.mrf.mxu0
  %v101 = vadd.f32 %v39, %v100
  %v102 = vand.u32 %v52, 4294901760
  %v103 = vsub.f32 %v52, %v102
  %v104 = vand.u32 %v103, 4294901760
  %v105 = vsub.f32 %v103, %v104
  %v106 = vand.u32 %v105, 4294901760
  %107 = vmatmul.f32.gmra.mxu0 %v106
  %v108 = vpop.f32.mrf.mxu0
  %v109 = vadd.f32 %v39, %v108
  %110 = vdwg.mxu0
  %111 = vmatpush.msra.mxu0 0.0
  %112 = vmatpush.msra.mxu0 0.0
  %113 = vmatpush.msra.mxu0 0.0
  %114 = vmatpush.msra.mxu0 0.0
  %115 = vmatpush.msra.mxu0 0.0
  %116 = vmatpush.msra.mxu0 0.0
  %117 = vmatpush.msra.mxu0 0.0
  %118 = vmatpush.msra.mxu0 0.0
  %v119 = vand.u32 %v36, 4294901760
  %v120 = vsub.f32 %v36, %v119
  %v121 = vand.u32 %v120, 4294901760
  %v122 = vsub.f32 %v120, %v121
  %v123 = vand.u32 %v122, 4294901760
  %124 = vmatpush.msra.mxu0 %v123
  %v125 = vand.u32 %v35, 4294901760
  %v126 = vsub.f32 %v35, %v125
  %v127 = vand.u32 %v126, 4294901760
  %v128 = vsub.f32 %v126, %v127
  %v129 = vand.u32 %v128, 4294901760
  %130 = vmatpush.msra.mxu0 %v129
  %v131 = vand.u32 %v34, 4294901760
  %v132 = vsub.f32 %v34, %v131
  %v133 = vand.u32 %v132, 4294901760
  %v134 = vsub.f32 %v132, %v133
  %v135 = vand.u32 %v134, 4294901760
  %136 = vmatpush.msra.mxu0 %v135
  %v137 = vand.u32 %v33, 4294901760
  %v138 = vsub.f32 %v33, %v137
  %v139 = vand.u32 %v138, 4294901760
  %v140 = vsub.f32 %v138, %v139
  %v141 = vand.u32 %v140, 4294901760
  %142 = vmatpush.msra.mxu0 %v141
  %v143 = vand.u32 %v32, 4294901760
  %v144 = vsub.f32 %v32, %v143
  %v145 = vand.u32 %v144, 4294901760
  %v146 = vsub.f32 %v144, %v145
  %v147 = vand.u32 %v146, 4294901760
  %148 = vmatpush.msra.mxu0 %v147
  %v149 = vand.u32 %v31, 4294901760
  %v150 = vsub.f32 %v31, %v149
  %v151 = vand.u32 %v150, 4294901760
  %v152 = vsub.f32 %v150, %v151
  %v153 = vand.u32 %v152, 4294901760
  %154 = vmatpush.msra.mxu0 %v153
  %v155 = vand.u32 %v30, 4294901760
  %v156 = vsub.f32 %v30, %v155
  %v157 = vand.u32 %v156, 4294901760
  %v158 = vsub.f32 %v156, %v157
  %v159 = vand.u32 %v158, 4294901760
  %160 = vmatpush.msra.mxu0 %v159
  %v161 = vand.u32 %v29, 4294901760
  %v162 = vsub.f32 %v29, %v161
  %v163 = vand.u32 %v162, 4294901760
  %v164 = vsub.f32 %v162, %v163
  %v165 = vand.u32 %v164, 4294901760
  %166 = vmatpush.msra.mxu0 %v165
  %v167 = vand.u32 %v43, 4294901760
  %168 = vmatmul.f32.gmra.mxu0 %v167
  %v169 = vpop.f32.mrf.mxu0
  %v170 = vadd.f32 %v85, %v169
  %v171 = vand.u32 %v46, 4294901760
  %172 = vmatmul.f32.gmra.mxu0 %v171
  %v173 = vpop.f32.mrf.mxu0
  %v174 = vadd.f32 %v93, %v173
  %v175 = vand.u32 %v49, 4294901760
  %176 = vmatmul.f32.gmra.mxu0 %v175
  %v177 = vpop.f32.mrf.mxu0
  %v178 = vadd.f32 %v101, %v177
  %v179 = vand.u32 %v52, 4294901760
  %180 = vmatmul.f32.gmra.mxu0 %v179
  %v181 = vpop.f32.mrf.mxu0
  %v182 = vadd.f32 %v109, %v181
  %183 = vdwg.mxu0
  %184 = vmatpush.msra.mxu0 0.0
  %185 = vmatpush.msra.mxu0 0.0
  %186 = vmatpush.msra.mxu0 0.0
  %187 = vmatpush.msra.mxu0 0.0
  %188 = vmatpush.msra.mxu0 0.0
  %189 = vmatpush.msra.mxu0 0.0
  %190 = vmatpush.msra.mxu0 0.0
  %191 = vmatpush.msra.mxu0 0.0
  %v192 = vand.u32 %v36, 4294901760
  %v193 = vsub.f32 %v36, %v192
  %194 = vmatpush.msra.mxu0 %v193
  %v195 = vand.u32 %v35, 4294901760
  %v196 = vsub.f32 %v35, %v195
  %197 = vmatpush.msra.mxu0 %v196
  %v198 = vand.u32 %v34, 4294901760
  %v199 = vsub.f32 %v34, %v198
  %200 = vmatpush.msra.mxu0 %v199
  %v201 = vand.u32 %v33, 4294901760
  %v202 = vsub.f32 %v33, %v201
  %203 = vmatpush.msra.mxu0 %v202
  %v204 = vand.u32 %v32, 4294901760
  %v205 = vsub.f32 %v32, %v204
  %206 = vmatpush.msra.mxu0 %v205
  %v207 = vand.u32 %v31, 4294901760
  %v208 = vsub.f32 %v31, %v207
  %209 = vmatpush.msra.mxu0 %v208
  %v210 = vand.u32 %v30, 4294901760
  %v211 = vsub.f32 %v30, %v210
  %212 = vmatpush.msra.mxu0 %v211
  %v213 = vand.u32 %v29, 4294901760
  %v214 = vsub.f32 %v29, %v213
  %215 = vmatpush.msra.mxu0 %v214
  %v216 = vand.u32 %v43, 4294901760
  %v217 = vsub.f32 %v43, %v216
  %218 = vmatmul.f32.gmra.mxu0 %v217
  %v219 = vpop.f32.mrf.mxu0
  %v220 = vadd.f32 %v170, %v219
  %v221 = vand.u32 %v46, 4294901760
  %v222 = vsub.f32 %v46, %v221
  %223 = vmatmul.f32.gmra.mxu0 %v222
  %v224 = vpop.f32.mrf.mxu0
  %v225 = vadd.f32 %v174, %v224
  %v226 = vand.u32 %v49, 4294901760
  %v227 = vsub.f32 %v49, %v226
  %228 = vmatmul.f32.gmra.mxu0 %v227
  %v229 = vpop.f32.mrf.mxu0
  %v230 = vadd.f32 %v178, %v229
  %v231 = vand.u32 %v52, 4294901760
  %v232 = vsub.f32 %v52, %v231
  %233 = vmatmul.f32.gmra.mxu0 %v232
  %v234 = vpop.f32.mrf.mxu0
  %v235 = vadd.f32 %v182, %v234
  %236 = vdwg.mxu0
  %237 = vmatpush.msra.mxu0 0.0
  %238 = vmatpush.msra.mxu0 0.0
  %239 = vmatpush.msra.mxu0 0.0
  %240 = vmatpush.msra.mxu0 0.0
  %241 = vmatpush.msra.mxu0 0.0
  %242 = vmatpush.msra.mxu0 0.0
  %243 = vmatpush.msra.mxu0 0.0
  %244 = vmatpush.msra.mxu0 0.0
  %v245 = vand.u32 %v36, 4294901760
  %246 = vmatpush.msra.mxu0 %v245
  %v247 = vand.u32 %v35, 4294901760
  %248 = vmatpush.msra.mxu0 %v247
  %v249 = vand.u32 %v34, 4294901760
  %250 = vmatpush.msra.mxu0 %v249
  %v251 = vand.u32 %v33, 4294901760
  %252 = vmatpush.msra.mxu0 %v251
  %v253 = vand.u32 %v32, 4294901760
  %254 = vmatpush.msra.mxu0 %v253
  %v255 = vand.u32 %v31, 4294901760
  %256 = vmatpush.msra.mxu0 %v255
  %v257 = vand.u32 %v30, 4294901760
  %258 = vmatpush.msra.mxu0 %v257
  %v259 = vand.u32 %v29, 4294901760
  %260 = vmatpush.msra.mxu0 %v259
  %v261 = vand.u32 %v43, 4294901760
  %v262 = vsub.f32 %v43, %v261
  %v263 = vand.u32 %v262, 4294901760
  %264 = vmatmul.f32.gmra.mxu0 %v263
  %v265 = vpop.f32.mrf.mxu0
  %v266 = vadd.f32 %v220, %v265
  %v267 = vand.u32 %v46, 4294901760
  %v268 = vsub.f32 %v46, %v267
  %v269 = vand.u32 %v268, 4294901760
  %270 = vmatmul.f32.gmra.mxu0 %v269
  %v271 = vpop.f32.mrf.mxu0
  %v272 = vadd.f32 %v225, %v271
  %v273 = vand.u32 %v49, 4294901760
  %v274 = vsub.f32 %v49, %v273
  %v275 = vand.u32 %v274, 4294901760
  %276 = vmatmul.f32.gmra.mxu0 %v275
  %v277 = vpop.f32.mrf.mxu0
  %v278 = vadd.f32 %v230, %v277
  %v279 = vand.u32 %v52, 4294901760
  %v280 = vsub.f32 %v52, %v279
  %v281 = vand.u32 %v280, 4294901760
  %282 = vmatmul.f32.gmra.mxu0 %v281
  %v283 = vpop.f32.mrf.mxu0
  %v284 = vadd.f32 %v235, %v283
  %285 = vdwg.mxu0
  %286 = vmatpush.msra.mxu0 0.0
  %287 = vmatpush.msra.mxu0 0.0
  %288 = vmatpush.msra.mxu0 0.0
  %289 = vmatpush.msra.mxu0 0.0
  %290 = vmatpush.msra.mxu0 0.0
  %291 = vmatpush.msra.mxu0 0.0
  %292 = vmatpush.msra.mxu0 0.0
  %293 = vmatpush.msra.mxu0 0.0
  %v294 = vand.u32 %v36, 4294901760
  %v295 = vsub.f32 %v36, %v294
  %v296 = vand.u32 %v295, 4294901760
  %297 = vmatpush.msra.mxu0 %v296
  %v298 = vand.u32 %v35, 4294901760
  %v299 = vsub.f32 %v35, %v298
  %v300 = vand.u32 %v299, 4294901760
  %301 = vmatpush.msra.mxu0 %v300
  %v302 = vand.u32 %v34, 4294901760
  %v303 = vsub.f32 %v34, %v302
  %v304 = vand.u32 %v303, 4294901760
  %305 = vmatpush.msra.mxu0 %v304
  %v306 = vand.u32 %v33, 4294901760
  %v307 = vsub.f32 %v33, %v306
  %v308 = vand.u32 %v307, 4294901760
  %309 = vmatpush.msra.mxu0 %v308
  %v310 = vand.u32 %v32, 4294901760
  %v311 = vsub.f32 %v32, %v310
  %v312 = vand.u32 %v311, 4294901760
  %313 = vmatpush.msra.mxu0 %v312
  %v314 = vand.u32 %v31, 4294901760
  %v315 = vsub.f32 %v31, %v314
  %v316 = vand.u32 %v315, 4294901760
  %317 = vmatpush.msra.mxu0 %v316
  %v318 = vand.u32 %v30, 4294901760
  %v319 = vsub.f32 %v30, %v318
  %v320 = vand.u32 %v319, 4294901760
  %321 = vmatpush.msra.mxu0 %v320
  %v322 = vand.u32 %v29, 4294901760
  %v323 = vsub.f32 %v29, %v322
  %v324 = vand.u32 %v323, 4294901760
  %325 = vmatpush.msra.mxu0 %v324
  %v326 = vand.u32 %v43, 4294901760
  %327 = vmatmul.f32.gmra.mxu0 %v326
  %v328 = vpop.f32.mrf.mxu0
  %v329 = vadd.f32 %v266, %v328
  %v330 = vand.u32 %v46, 4294901760
  %331 = vmatmul.f32.gmra.mxu0 %v330
  %v332 = vpop.f32.mrf.mxu0
  %v333 = vadd.f32 %v272, %v332
  %v334 = vand.u32 %v49, 4294901760
  %335 = vmatmul.f32.gmra.mxu0 %v334
  %v336 = vpop.f32.mrf.mxu0
  %v337 = vadd.f32 %v278, %v336
  %v338 = vand.u32 %v52, 4294901760
  %339 = vmatmul.f32.gmra.mxu0 %v338
  %v340 = vpop.f32.mrf.mxu0
  %v341 = vadd.f32 %v284, %v340
  %342 = vdwg.mxu0
  %343 = vmatpush.msra.mxu0 0.0
  %344 = vmatpush.msra.mxu0 0.0
  %345 = vmatpush.msra.mxu0 0.0
  %346 = vmatpush.msra.mxu0 0.0
  %347 = vmatpush.msra.mxu0 0.0
  %348 = vmatpush.msra.mxu0 0.0
  %349 = vmatpush.msra.mxu0 0.0
  %350 = vmatpush.msra.mxu0 0.0
  %v351 = vand.u32 %v36, 4294901760
  %352 = vmatpush.msra.mxu0 %v351
  %v353 = vand.u32 %v35, 4294901760
  %354 = vmatpush.msra.mxu0 %v353
  %v355 = vand.u32 %v34, 4294901760
  %356 = vmatpush.msra.mxu0 %v355
  %v357 = vand.u32 %v33, 4294901760
  %358 = vmatpush.msra.mxu0 %v357
  %v359 = vand.u32 %v32, 4294901760
  %360 = vmatpush.msra.mxu0 %v359
  %v361 = vand.u32 %v31, 4294901760
  %362 = vmatpush.msra.mxu0 %v361
  %v363 = vand.u32 %v30, 4294901760
  %364 = vmatpush.msra.mxu0 %v363
  %v365 = vand.u32 %v29, 4294901760
  %366 = vmatpush.msra.mxu0 %v365
  %v367 = vand.u32 %v43, 4294901760
  %368 = vmatmul.f32.gmra.mxu0 %v367
  %v369 = vpop.f32.mrf.mxu0
  %v370 = vadd.f32 %v329, %v369
  %v371 = vand.u32 %v46, 4294901760
  %372 = vmatmul.f32.gmra.mxu0 %v371
  %v373 = vpop.f32.mrf.mxu0
  %v374 = vadd.f32 %v333, %v373
  %v375 = vand.u32 %v49, 4294901760
  %376 = vmatmul.f32.gmra.mxu0 %v375
  %v377 = vpop.f32.mrf.mxu0
  %v378 = vadd.f32 %v337, %v377
  %v379 = vand.u32 %v52, 4294901760
  %380 = vmatmul.f32.gmra.mxu0 %v379
  %v381 = vpop.f32.mrf.mxu0
  %v382 = vadd.f32 %v341, %v381
  %383 = vdwg.mxu0
  %v384 = vsub.f32 0.0, %v370
  %v385 = vsub.f32 0.0, %v374
  %v386 = vsub.f32 0.0, %v378
  %v387 = vsub.f32 0.0, %v382
  %v388 = vmul.f32 %v384, 1.442695
  %v389 = vpow.pop %v388
  %v390 = vmul.f32 %v385, 1.442695
  %v391 = vpow.pop %v390
  %v392 = vmul.f32 %v386, 1.442695
  %v393 = vpow.pop %v392
  %v394 = vmul.f32 %v387, 1.442695
  %v395 = vpow.pop %v394
  %v396 = vadd.f32 %v389, 1.0
  %v397 = vadd.f32 %v391, 1.0
  %v398 = vadd.f32 %v393, 1.0
  %v399 = vadd.f32 %v395, 1.0
  %v400 = vrcp.pop %v396
  %v401 = vmul.f32 %v396, %v400
  %v402 = vsub.f32 1.0, %v401
  %v403 = vmul.f32 %v400, %v402
  %v404 = vadd.f32 %v400, %v403
  %vm405 = vweird.f32 %v396
  %vm406 = vweird.f32 %v400
  %vm407 = vmor %vm405, %vm406
  %v408 = vsel %vm407, %v400, %v404
  %v409 = vand.u32 2147483647, %v396
  %vm410 = vcmp.eq.f32.partialorder %v409, 8.507059e+37
  %v411 = vand.u32 %v396, 2147483648
  %v412 = vor.u32 1.1754944e-38, %v411
  %v413 = vsel %vm410, %v412, %v408
  %v414 = vmul.f32 1.0, %v413
  %v415 = vrcp.pop %v397
  %v416 = vmul.f32 %v397, %v415
  %v417 = vsub.f32 1.0, %v416
  %v418 = vmul.f32 %v415, %v417
  %v419 = vadd.f32 %v415, %v418
  %vm420 = vweird.f32 %v397
  %vm421 = vweird.f32 %v415
  %vm422 = vmor %vm420, %vm421
  %v423 = vsel %vm422, %v415, %v419
  %v424 = vand.u32 2147483647, %v397
  %vm425 = vcmp.eq.f32.partialorder %v424, 8.507059e+37
  %v426 = vand.u32 %v397, 2147483648
  %v427 = vor.u32 1.1754944e-38, %v426
  %v428 = vsel %vm425, %v427, %v423
  %v429 = vmul.f32 1.0, %v428
  %v430 = vrcp.pop %v398
  %v431 = vmul.f32 %v398, %v430
  %v432 = vsub.f32 1.0, %v431
  %v433 = vmul.f32 %v430, %v432
  %v434 = vadd.f32 %v430, %v433
  %vm435 = vweird.f32 %v398
  %vm436 = vweird.f32 %v430
  %vm437 = vmor %vm435, %vm436
  %v438 = vsel %vm437, %v430, %v434
  %v439 = vand.u32 2147483647, %v398
  %vm440 = vcmp.eq.f32.partialorder %v439, 8.507059e+37
  %v441 = vand.u32 %v398, 2147483648
  %v442 = vor.u32 1.1754944e-38, %v441
  %v443 = vsel %vm440, %v442, %v438
  %v444 = vmul.f32 1.0, %v443
  %v445 = vrcp.pop %v399
  %v446 = vmul.f32 %v399, %v445
  %v447 = vsub.f32 1.0, %v446
  %v448 = vmul.f32 %v445, %v447
  %v449 = vadd.f32 %v445, %v448
  %vm450 = vweird.f32 %v399
  %vm451 = vweird.f32 %v445
  %vm452 = vmor %vm450, %vm451
  %v453 = vsel %vm452, %v445, %v449
  %v454 = vand.u32 2147483647, %v399
  %vm455 = vcmp.eq.f32.partialorder %v454, 8.507059e+37
  %v456 = vand.u32 %v399, 2147483648
  %v457 = vor.u32 1.1754944e-38, %v456
  %v458 = vsel %vm455, %v457, %v453
  %v459 = vmul.f32 1.0, %v458
  %v460 = vld [vmem:[%s4] sm:$0xff]
  %v461 = vld [vmem:[%s4 + $0x8] sm:$0xff]
  %v462 = vld [vmem:[%s4 + $0x10] sm:$0xff]
  %v463 = vld [vmem:[%s4 + $0x18] sm:$0xff]
  %v464 = vld [vmem:[#allocation2] sm:$0x1]
  %v466 = vperm.slane %v464, 0
  %vm468 = vcmask 261120
  %v470 = vsel %vm468, %v414, 0
  %v473 = vsel %vm468, %v429, 0
  %v476 = vsel %vm468, %v444, 0
  %v479 = vsel %vm468, %v459, 0
  %481 = vmatpush.msra.mxu0 0.0
  %482 = vmatpush.msra.mxu0 0.0
  %483 = vmatpush.msra.mxu0 0.0
  %484 = vmatpush.msra.mxu0 0.0
  %485 = vmatpush.msra.mxu0 0.0
  %486 = vmatpush.msra.mxu0 0.0
  %487 = vmatpush.msra.mxu0 0.0
  %488 = vmatpush.msra.mxu0 0.0
  %489 = vmatpush.msra.mxu0 0.0
  %490 = vmatpush.msra.mxu0 0.0
  %491 = vmatpush.msra.mxu0 0.0
  %492 = vmatpush.msra.mxu0 0.0
  %v493 = vand.u32 %v463, 4294901760
  %494 = vmatpush.msra.mxu0 %v493
  %v495 = vand.u32 %v462, 4294901760
  %496 = vmatpush.msra.mxu0 %v495
  %v497 = vand.u32 %v461, 4294901760
  %498 = vmatpush.msra.mxu0 %v497
  %v499 = vand.u32 %v460, 4294901760
  %500 = vmatpush.msra.mxu0 %v499
  %v501 = vand.u32 %v470, 4294901760
  %v502 = vsub.f32 %v470, %v501
  %v503 = vand.u32 %v502, 4294901760
  %v504 = vsub.f32 %v502, %v503
  %v505 = vand.u32 %v504, 4294901760
  %506 = vmatmul.f32.gmra.mxu0 %v505
  %v507 = vpop.f32.mrf.mxu0
  %v508 = vadd.f32 %v466, %v507
  %v509 = vand.u32 %v473, 4294901760
  %v510 = vsub.f32 %v473, %v509
  %v511 = vand.u32 %v510, 4294901760
  %v512 = vsub.f32 %v510, %v511
  %v513 = vand.u32 %v512, 4294901760
  %514 = vmatmul.f32.gmra.mxu0 %v513
  %v515 = vpop.f32.mrf.mxu0
  %v516 = vadd.f32 %v466, %v515
  %v517 = vand.u32 %v476, 4294901760
  %v518 = vsub.f32 %v476, %v517
  %v519 = vand.u32 %v518, 4294901760
  %v520 = vsub.f32 %v518, %v519
  %v521 = vand.u32 %v520, 4294901760
  %522 = vmatmul.f32.gmra.mxu0 %v521
  %v523 = vpop.f32.mrf.mxu0
  %v524 = vadd.f32 %v466, %v523
  %v525 = vand.u32 %v479, 4294901760
  %v526 = vsub.f32 %v479, %v525
  %v527 = vand.u32 %v526, 4294901760
  %v528 = vsub.f32 %v526, %v527
  %v529 = vand.u32 %v528, 4294901760
  %530 = vmatmul.f32.gmra.mxu0 %v529
  %v531 = vpop.f32.mrf.mxu0
  %v532 = vadd.f32 %v466, %v531
  %533 = vdwg.mxu0
  %534 = vmatpush.msra.mxu0 0.0
  %535 = vmatpush.msra.mxu0 0.0
  %536 = vmatpush.msra.mxu0 0.0
  %537 = vmatpush.msra.mxu0 0.0
  %538 = vmatpush.msra.mxu0 0.0
  %539 = vmatpush.msra.mxu0 0.0
  %540 = vmatpush.msra.mxu0 0.0
  %541 = vmatpush.msra.mxu0 0.0
  %542 = vmatpush.msra.mxu0 0.0
  %543 = vmatpush.msra.mxu0 0.0
  %544 = vmatpush.msra.mxu0 0.0
  %545 = vmatpush.msra.mxu0 0.0
  %v546 = vand.u32 %v463, 4294901760
  %v547 = vsub.f32 %v463, %v546
  %v548 = vand.u32 %v547, 4294901760
  %v549 = vsub.f32 %v547, %v548
  %v550 = vand.u32 %v549, 4294901760
  %551 = vmatpush.msra.mxu0 %v550
  %v552 = vand.u32 %v462, 4294901760
  %v553 = vsub.f32 %v462, %v552
  %v554 = vand.u32 %v553, 4294901760
  %v555 = vsub.f32 %v553, %v554
  %v556 = vand.u32 %v555, 4294901760
  %557 = vmatpush.msra.mxu0 %v556
  %v558 = vand.u32 %v461, 4294901760
  %v559 = vsub.f32 %v461, %v558
  %v560 = vand.u32 %v559, 4294901760
  %v561 = vsub.f32 %v559, %v560
  %v562 = vand.u32 %v561, 4294901760
  %563 = vmatpush.msra.mxu0 %v562
  %v564 = vand.u32 %v460, 4294901760
  %v565 = vsub.f32 %v460, %v564
  %v566 = vand.u32 %v565, 4294901760
  %v567 = vsub.f32 %v565, %v566
  %v568 = vand.u32 %v567, 4294901760
  %569 = vmatpush.msra.mxu0 %v568
  %v570 = vand.u32 %v470, 4294901760
  %571 = vmatmul.f32.gmra.mxu0 %v570
  %v572 = vpop.f32.mrf.mxu0
  %v573 = vadd.f32 %v508, %v572
  %v574 = vand.u32 %v473, 4294901760
  %575 = vmatmul.f32.gmra.mxu0 %v574
  %v576 = vpop.f32.mrf.mxu0
  %v577 = vadd.f32 %v516, %v576
  %v578 = vand.u32 %v476, 4294901760
  %579 = vmatmul.f32.gmra.mxu0 %v578
  %v580 = vpop.f32.mrf.mxu0
  %v581 = vadd.f32 %v524, %v580
  %v582 = vand.u32 %v479, 4294901760
  %583 = vmatmul.f32.gmra.mxu0 %v582
  %v584 = vpop.f32.mrf.mxu0
  %v585 = vadd.f32 %v532, %v584
  %586 = vdwg.mxu0
  %587 = vmatpush.msra.mxu0 0.0
  %588 = vmatpush.msra.mxu0 0.0
  %589 = vmatpush.msra.mxu0 0.0
  %590 = vmatpush.msra.mxu0 0.0
  %591 = vmatpush.msra.mxu0 0.0
  %592 = vmatpush.msra.mxu0 0.0
  %593 = vmatpush.msra.mxu0 0.0
  %594 = vmatpush.msra.mxu0 0.0
  %595 = vmatpush.msra.mxu0 0.0
  %596 = vmatpush.msra.mxu0 0.0
  %597 = vmatpush.msra.mxu0 0.0
  %598 = vmatpush.msra.mxu0 0.0
  %v599 = vand.u32 %v463, 4294901760
  %v600 = vsub.f32 %v463, %v599
  %601 = vmatpush.msra.mxu0 %v600
  %v602 = vand.u32 %v462, 4294901760
  %v603 = vsub.f32 %v462, %v602
  %604 = vmatpush.msra.mxu0 %v603
  %v605 = vand.u32 %v461, 4294901760
  %v606 = vsub.f32 %v461, %v605
  %607 = vmatpush.msra.mxu0 %v606
  %v608 = vand.u32 %v460, 4294901760
  %v609 = vsub.f32 %v460, %v608
  %610 = vmatpush.msra.mxu0 %v609
  %v611 = vand.u32 %v470, 4294901760
  %v612 = vsub.f32 %v470, %v611
  %613 = vmatmul.f32.gmra.mxu0 %v612
  %v614 = vpop.f32.mrf.mxu0
  %v615 = vadd.f32 %v573, %v614
  %v616 = vand.u32 %v473, 4294901760
  %v617 = vsub.f32 %v473, %v616
  %618 = vmatmul.f32.gmra.mxu0 %v617
  %v619 = vpop.f32.mrf.mxu0
  %v620 = vadd.f32 %v577, %v619
  %v621 = vand.u32 %v476, 4294901760
  %v622 = vsub.f32 %v476, %v621
  %623 = vmatmul.f32.gmra.mxu0 %v622
  %v624 = vpop.f32.mrf.mxu0
  %v625 = vadd.f32 %v581, %v624
  %v626 = vand.u32 %v479, 4294901760
  %v627 = vsub.f32 %v479, %v626
  %628 = vmatmul.f32.gmra.mxu0 %v627
  %v629 = vpop.f32.mrf.mxu0
  %v630 = vadd.f32 %v585, %v629
  %631 = vdwg.mxu0
  %632 = vmatpush.msra.mxu0 0.0
  %633 = vmatpush.msra.mxu0 0.0
  %634 = vmatpush.msra.mxu0 0.0
  %635 = vmatpush.msra.mxu0 0.0
  %636 = vmatpush.msra.mxu0 0.0
  %637 = vmatpush.msra.mxu0 0.0
  %638 = vmatpush.msra.mxu0 0.0
  %639 = vmatpush.msra.mxu0 0.0
  %640 = vmatpush.msra.mxu0 0.0
  %641 = vmatpush.msra.mxu0 0.0
  %642 = vmatpush.msra.mxu0 0.0
  %643 = vmatpush.msra.mxu0 0.0
  %v644 = vand.u32 %v463, 4294901760
  %645 = vmatpush.msra.mxu0 %v644
  %v646 = vand.u32 %v462, 4294901760
  %647 = vmatpush.msra.mxu0 %v646
  %v648 = vand.u32 %v461, 4294901760
  %649 = vmatpush.msra.mxu0 %v648
  %v650 = vand.u32 %v460, 4294901760
  %651 = vmatpush.msra.mxu0 %v650
  %v652 = vand.u32 %v470, 4294901760
  %v653 = vsub.f32 %v470, %v652
  %v654 = vand.u32 %v653, 4294901760
  %655 = vmatmul.f32.gmra.mxu0 %v654
  %v656 = vpop.f32.mrf.mxu0
  %v657 = vadd.f32 %v615, %v656
  %v658 = vand.u32 %v473, 4294901760
  %v659 = vsub.f32 %v473, %v658
  %v660 = vand.u32 %v659, 4294901760
  %661 = vmatmul.f32.gmra.mxu0 %v660
  %v662 = vpop.f32.mrf.mxu0
  %v663 = vadd.f32 %v620, %v662
  %v664 = vand.u32 %v476, 4294901760
  %v665 = vsub.f32 %v476, %v664
  %v666 = vand.u32 %v665, 4294901760
  %667 = vmatmul.f32.gmra.mxu0 %v666
  %v668 = vpop.f32.mrf.mxu0
  %v669 = vadd.f32 %v625, %v668
  %v670 = vand.u32 %v479, 4294901760
  %v671 = vsub.f32 %v479, %v670
  %v672 = vand.u32 %v671, 4294901760
  %673 = vmatmul.f32.gmra.mxu0 %v672
  %v674 = vpop.f32.mrf.mxu0
  %v675 = vadd.f32 %v630, %v674
  %676 = vdwg.mxu0
  %677 = vmatpush.msra.mxu0 0.0
  %678 = vmatpush.msra.mxu0 0.0
  %679 = vmatpush.msra.mxu0 0.0
  %680 = vmatpush.msra.mxu0 0.0
  %681 = vmatpush.msra.mxu0 0.0
  %682 = vmatpush.msra.mxu0 0.0
  %683 = vmatpush.msra.mxu0 0.0
  %684 = vmatpush.msra.mxu0 0.0
  %685 = vmatpush.msra.mxu0 0.0
  %686 = vmatpush.msra.mxu0 0.0
  %687 = vmatpush.msra.mxu0 0.0
  %688 = vmatpush.msra.mxu0 0.0
  %v689 = vand.u32 %v463, 4294901760
  %v690 = vsub.f32 %v463, %v689
  %v691 = vand.u32 %v690, 4294901760
  %692 = vmatpush.msra.mxu0 %v691
  %v693 = vand.u32 %v462, 4294901760
  %v694 = vsub.f32 %v462, %v693
  %v695 = vand.u32 %v694, 4294901760
  %696 = vmatpush.msra.mxu0 %v695
  %v697 = vand.u32 %v461, 4294901760
  %v698 = vsub.f32 %v461, %v697
  %v699 = vand.u32 %v698, 4294901760
  %700 = vmatpush.msra.mxu0 %v699
  %v701 = vand.u32 %v460, 4294901760
  %v702 = vsub.f32 %v460, %v701
  %v703 = vand.u32 %v702, 4294901760
  %704 = vmatpush.msra.mxu0 %v703
  %v705 = vand.u32 %v470, 4294901760
  %706 = vmatmul.f32.gmra.mxu0 %v705
  %v707 = vpop.f32.mrf.mxu0
  %v708 = vadd.f32 %v657, %v707
  %v709 = vand.u32 %v473, 4294901760
  %710 = vmatmul.f32.gmra.mxu0 %v709
  %v711 = vpop.f32.mrf.mxu0
  %v712 = vadd.f32 %v663, %v711
  %v713 = vand.u32 %v476, 4294901760
  %714 = vmatmul.f32.gmra.mxu0 %v713
  %v715 = vpop.f32.mrf.mxu0
  %v716 = vadd.f32 %v669, %v715
  %v717 = vand.u32 %v479, 4294901760
  %718 = vmatmul.f32.gmra.mxu0 %v717
  %v719 = vpop.f32.mrf.mxu0
  %v720 = vadd.f32 %v675, %v719
  %721 = vdwg.mxu0
  %722 = vmatpush.msra.mxu0 0.0
  %723 = vmatpush.msra.mxu0 0.0
  %724 = vmatpush.msra.mxu0 0.0
  %725 = vmatpush.msra.mxu0 0.0
  %726 = vmatpush.msra.mxu0 0.0
  %727 = vmatpush.msra.mxu0 0.0
  %728 = vmatpush.msra.mxu0 0.0
  %729 = vmatpush.msra.mxu0 0.0
  %730 = vmatpush.msra.mxu0 0.0
  %731 = vmatpush.msra.mxu0 0.0
  %732 = vmatpush.msra.mxu0 0.0
  %733 = vmatpush.msra.mxu0 0.0
  %v734 = vand.u32 %v463, 4294901760
  %735 = vmatpush.msra.mxu0 %v734
  %v736 = vand.u32 %v462, 4294901760
  %737 = vmatpush.msra.mxu0 %v736
  %v738 = vand.u32 %v461, 4294901760
  %739 = vmatpush.msra.mxu0 %v738
  %v740 = vand.u32 %v460, 4294901760
  %741 = vmatpush.msra.mxu0 %v740
  %v742 = vand.u32 %v470, 4294901760
  %743 = vmatmul.f32.gmra.mxu0 %v742
  %v744 = vpop.f32.mrf.mxu0
  %v745 = vadd.f32 %v708, %v744
  %v746 = vand.u32 %v473, 4294901760
  %747 = vmatmul.f32.gmra.mxu0 %v746
  %v748 = vpop.f32.mrf.mxu0
  %v749 = vadd.f32 %v712, %v748
  %v750 = vand.u32 %v476, 4294901760
  %751 = vmatmul.f32.gmra.mxu0 %v750
  %v752 = vpop.f32.mrf.mxu0
  %v753 = vadd.f32 %v716, %v752
  %v754 = vand.u32 %v479, 4294901760
  %755 = vmatmul.f32.gmra.mxu0 %v754
  %v756 = vpop.f32.mrf.mxu0
  %v757 = vadd.f32 %v720, %v756
  %758 = vdwg.mxu0
  %v759 = vlaneseq
  %v760 = vshrl.u32 %v759, 7
  %v761 = vld [vmem:[%s1] sm:$0x1]
  %v762 = vld [vmem:[%s1 + $0x1] sm:$0x1]
  %v763 = vld [vmem:[%s1 + $0x2] sm:$0x1]
  %v764 = vld [vmem:[%s1 + $0x3] sm:$0x1]
  %v765 = vperm.slane %v761, 0
  %v766 = vperm.slane %v762, 0
  %v767 = vperm.slane %v763, 0
  %v768 = vperm.slane %v764, 0
  %vm769 = vcmp.ge.s32.totalorder %v760, %v765
  %vm770 = vcmp.ge.s32.totalorder %v760, %v766
  %vm771 = vcmp.ge.s32.totalorder %v760, %v767
  %vm772 = vcmp.ge.s32.totalorder %v760, %v768
  %v773 = vsel %vm769, -inf, %v745
  %v774 = vsel %vm770, -inf, %v749
  %v775 = vsel %vm771, -inf, %v753
  %v776 = vsel %vm772, -inf, %v757
  %vm777 = vcmask 7168
  %v778 = vsel %vm777, %v773, -inf
  %v779 = vrot.slane %v778, 4
  %v780 = vmax.f32 %v778, %v779
  %v781 = vrot.slane %v780, 2
  %v782 = vmax.f32 %v780, %v781
  %v783 = vrot.slane %v782, 1
  %v784 = vmax.f32 %v782, %v783
  %v785 = vsel %vm777, %v774, -inf
  %v786 = vrot.slane %v785, 4
  %v787 = vmax.f32 %v785, %v786
  %v788 = vrot.slane %v787, 2
  %v789 = vmax.f32 %v787, %v788
  %v790 = vrot.slane %v789, 1
  %v791 = vmax.f32 %v789, %v790
  %v792 = vsel %vm777, %v775, -inf
  %v793 = vrot.slane %v792, 4
  %v794 = vmax.f32 %v792, %v793
  %v795 = vrot.slane %v794, 2
  %v796 = vmax.f32 %v794, %v795
  %v797 = vrot.slane %v796, 1
  %v798 = vmax.f32 %v796, %v797
  %v799 = vsel %vm777, %v776, -inf
  %v800 = vrot.slane %v799, 4
  %v801 = vmax.f32 %v799, %v800
  %v802 = vrot.slane %v801, 2
  %v803 = vmax.f32 %v801, %v802
  %v804 = vrot.slane %v803, 1
  %v805 = vmax.f32 %v803, %v804
  %v806 = vsub.f32 %v773, %v784
  %v807 = vsub.f32 %v774, %v791
  %v808 = vsub.f32 %v775, %v798
  %v809 = vsub.f32 %v776, %v805
  %v810 = vmul.f32 %v806, 1.442695
  %v811 = vpow.pop %v810
  %v812 = vmul.f32 %v807, 1.442695
  %v813 = vpow.pop %v812
  %v814 = vmul.f32 %v808, 1.442695
  %v815 = vpow.pop %v814
  %v816 = vmul.f32 %v809, 1.442695
  %v817 = vpow.pop %v816
  %v818 = vsel %vm777, %v811, 0.0
  %v819 = vrot.slane %v818, 4
  %v820 = vadd.f32 %v818, %v819
  %v821 = vrot.slane %v820, 2
  %v822 = vadd.f32 %v820, %v821
  %v823 = vrot.slane %v822, 1
  %v824 = vadd.f32 %v822, %v823
  %v825 = vsel %vm777, %v813, 0.0
  %v826 = vrot.slane %v825, 4
  %v827 = vadd.f32 %v825, %v826
  %v828 = vrot.slane %v827, 2
  %v829 = vadd.f32 %v827, %v828
  %v830 = vrot.slane %v829, 1
  %v831 = vadd.f32 %v829, %v830
  %v832 = vsel %vm777, %v815, 0.0
  %v833 = vrot.slane %v832, 4
  %v834 = vadd.f32 %v832, %v833
  %v835 = vrot.slane %v834, 2
  %v836 = vadd.f32 %v834, %v835
  %v837 = vrot.slane %v836, 1
  %v838 = vadd.f32 %v836, %v837
  %v839 = vsel %vm777, %v817, 0.0
  %v840 = vrot.slane %v839, 4
  %v841 = vadd.f32 %v839, %v840
  %v842 = vrot.slane %v841, 2
  %v843 = vadd.f32 %v841, %v842
  %v844 = vrot.slane %v843, 1
  %v845 = vadd.f32 %v843, %v844
  %v846 = vrcp.pop %v824
  %v847 = vmul.f32 %v824, %v846
  %v848 = vsub.f32 1.0, %v847
  %v849 = vmul.f32 %v846, %v848
  %v850 = vadd.f32 %v846, %v849
  %vm851 = vweird.f32 %v824
  %vm852 = vweird.f32 %v846
  %vm853 = vmor %vm851, %vm852
  %v854 = vsel %vm853, %v846, %v850
  %v855 = vand.u32 2147483647, %v824
  %vm856 = vcmp.eq.f32.partialorder %v855, 8.507059e+37
  %v857 = vand.u32 %v824, 2147483648
  %v858 = vor.u32 1.1754944e-38, %v857
  %v859 = vsel %vm856, %v858, %v854
  %v860 = vmul.f32 %v811, %v859
  %v861 = vrcp.pop %v831
  %v862 = vmul.f32 %v831, %v861
  %v863 = vsub.f32 1.0, %v862
  %v864 = vmul.f32 %v861, %v863
  %v865 = vadd.f32 %v861, %v864
  %vm866 = vweird.f32 %v831
  %vm867 = vweird.f32 %v861
  %vm868 = vmor %vm866, %vm867
  %v869 = vsel %vm868, %v861, %v865
  %v870 = vand.u32 2147483647, %v831
  %vm871 = vcmp.eq.f32.partialorder %v870, 8.507059e+37
  %v872 = vand.u32 %v831, 2147483648
  %v873 = vor.u32 1.1754944e-38, %v872
  %v874 = vsel %vm871, %v873, %v869
  %v875 = vmul.f32 %v813, %v874
  %v876 = vrcp.pop %v838
  %v877 = vmul.f32 %v838, %v876
  %v878 = vsub.f32 1.0, %v877
  %v879 = vmul.f32 %v876, %v878
  %v880 = vadd.f32 %v876, %v879
  %vm881 = vweird.f32 %v838
  %vm882 = vweird.f32 %v876
  %vm883 = vmor %vm881, %vm882
  %v884 = vsel %vm883, %v876, %v880
  %v885 = vand.u32 2147483647, %v838
  %vm886 = vcmp.eq.f32.partialorder %v885, 8.507059e+37
  %v887 = vand.u32 %v838, 2147483648
  %v888 = vor.u32 1.1754944e-38, %v887
  %v889 = vsel %vm886, %v888, %v884
  %v890 = vmul.f32 %v815, %v889
  %v891 = vrcp.pop %v845
  %v892 = vmul.f32 %v845, %v891
  %v893 = vsub.f32 1.0, %v892
  %v894 = vmul.f32 %v891, %v893
  %v895 = vadd.f32 %v891, %v894
  %vm896 = vweird.f32 %v845
  %vm897 = vweird.f32 %v891
  %vm898 = vmor %vm896, %vm897
  %v899 = vsel %vm898, %v891, %v895
  %v900 = vand.u32 2147483647, %v845
  %vm901 = vcmp.eq.f32.partialorder %v900, 8.507059e+37
  %v902 = vand.u32 %v845, 2147483648
  %v903 = vor.u32 1.1754944e-38, %v902
  %v904 = vsel %vm901, %v903, %v899
  %v905 = vmul.f32 %v817, %v904
  %906 = vst.msk [vmem:[%s6] sm:$0xff] %vm777, %v860
  %907 = vst.msk [vmem:[%s6 + $0x8] sm:$0xff] %vm777, %v875
  %908 = vst.msk [vmem:[%s6 + $0x10] sm:$0xff] %vm777, %v890
  %909 = vst.msk [vmem:[%s6 + $0x18] sm:$0xff] %vm777, %v905
  // Predicated region
  $region26: #{attn_forward.1} parent=0 // pred_check
    _
  $region27: #{attn_forward.1} parent=0 // pred_check_branch
    %911 = sbr.rel (0) target = $region29
  $region28: #{attn_forward.1} parent=0 // pred_region
    _
  $region29: #{attn_forward.1} parent=0 // pred_fallthru
    _
  // Predicated region
  $region30: #{attn_forward.1} parent=0 // pred_check
    _
  $region31: #{attn_forward.1} parent=0 // pred_check_branch
    %913 = sbr.rel (0) target = $region33
  $region32: #{attn_forward.1} parent=0 // pred_region
    _
  $region33: #{attn_forward.1} parent=0 // pred_fallthru
    _

</llo_original>
